<compile_context>
chip_gen: v7x
topology: tpu7x:2x2x1
jax: 0.10.0
libtpu: 0.0.40
codegen_flags: <defaults>
</compile_context>

<pallas_src>
import jax
import jax.numpy as jnp
from jax.experimental import pallas as pl
from jax.experimental.pallas import tpu as pltpu


def _round_up(x: int, m: int) -> int:
    return ((x + m - 1) // m) * m


def _pad_bytes(rows: int, cols: int, itemsize: int = 4) -> int:
    """VMEM bytes of a (rows, cols) tile after TPU (sublane, 128) layout padding."""
    sublane = 8 * (4 // itemsize)          # 8 for f32, 16 for bf16
    return _round_up(rows, sublane) * _round_up(cols, 128) * itemsize


def _make_mlp_kernel(n_linear: int, vpu_first_layer: bool, compute_dtype):
    """Feature-major MLP kernel.

    refs = (x_ref, w0, b0, w1, b1, ..., w_{L-1}, b_{L-1}, out_ref)
      x_ref : (input_dim, tile_b) f32       -- batch on the lane axis
      w_i   : (out_i, in_i)  PyTorch layout -- compute_dtype (f32 for VPU layer)
      b_i   : (out_i, 1) f32
      out   : (final_out, tile_b) f32
    """

    def kernel(*refs):
        x_ref = refs[0]
        out_ref = refs[-1]

        h = x_ref[...]                                   # (in_dim, tile_b) f32
        if h.dtype != jnp.float32:
            h = h.astype(jnp.float32)

        for i in range(n_linear):
            w_ref = refs[1 + 2 * i]
            b = refs[2 + 2 * i][...]                     # (out_i, 1) f32

            if i == 0 and vpu_first_layer:
                # K (= input_dim) is tiny: do the first layer as VPU broadcast
                # multiply-adds instead of wasting an MXU pass.
                w = w_ref[...]                           # (hidden, in_dim) f32
                acc = b                                  # (hidden, 1) broadcasts up
                for j in range(w.shape[1]):              # in_dim is tiny & static
                    acc = acc + w[:, j:j + 1] * h[j:j + 1, :]
                h = acc                                  # (hidden, tile_b) f32
            else:
                rhs = h if h.dtype == compute_dtype else h.astype(compute_dtype)
                # W (out,in) @ H (in, tile_b): MXU N = tile_b (well-filled),
                # f32 accumulation regardless of operand dtype.
                h = jnp.dot(w_ref[...], rhs,
                            preferred_element_type=jnp.float32) + b

            if i < n_linear - 1:
                h = jnp.maximum(h, 0.0)                  # ReLU in f32 (v5e-safe)

        out_ref[...] = h.astype(out_ref.dtype)           # lane-dense store

    return kernel


def neural_rk_forward(x, weights, biases, s: int, output_dim: int, *,
                      tile_b: int | None = None,
                      compute_dtype=jnp.bfloat16):
    """
    x:        (B, input_dim) float32
    weights:  list of (out_features, in_features)  -- PyTorch Linear layout
    biases:   list of (out_features,)
    returns:  (B, s, output_dim) float32
    compute_dtype: MXU operand dtype (bf16 fast on all generations, f32 exact);
                   accumulation is always f32.
    """
    n_linear = len(weights)
    assert len(biases) == n_linear and n_linear >= 1

    input_dim = weights[0].shape[1]
    final_out = weights[-1].shape[0]
    assert final_out == s * output_dim, (
        f"last layer out_features ({final_out}) != s*output_dim ({s * output_dim})")
    assert x.ndim == 2 and x.shape[1] == input_dim, x.shape

    B = x.shape[0]
    LANE = 128
    if tile_b is None:
        tile_b = min(2048, _round_up(B, LANE))
        # v7x: make sure both TensorCores get a grid step when batch allows it.
        if _round_up(B, LANE) >= 2 * LANE:
            tile_b = min(tile_b, _round_up((B + 1) // 2, LANE))
    assert tile_b > 0
    tile_b = max(LANE, _round_up(tile_b, LANE))          # lane-dense batch tiles
    B_pad = _round_up(B, tile_b)
    grid_b = B_pad // tile_b

    # Feature-major input: (input_dim, B_pad); pad rows are sliced off at the end.
    x_t = jnp.asarray(x, jnp.float32).T
    if B_pad != B:
        x_t = jnp.pad(x_t, ((0, 0), (0, B_pad - B)))

    vpu_first_layer = input_dim < 8       # too small a K to be worth an MXU pass

    # --- Glue: weights kept in PyTorch (out, in) layout (that IS the matmul lhs
    # in feature-major). MXU weights cast to compute_dtype ONCE here; the VPU
    # first-layer weight and all biases stay f32.
    args = [x_t]
    dims = [input_dim]
    for i, (w, b) in enumerate(zip(weights, biases)):
        w_f = jnp.asarray(w, jnp.float32)
        if not (i == 0 and vpu_first_layer):
            w_f = w_f.astype(compute_dtype)
        args.append(w_f)
        args.append(jnp.asarray(b, jnp.float32).reshape(-1, 1))
        dims.append(w.shape[0])

    # --- BlockSpecs: x / out tiled over the batch (lane) axis; weights/biases
    # full-shape with a constant index_map so they stay VMEM-resident.
    x_spec = pl.BlockSpec((input_dim, tile_b), lambda gi: (0, gi))
    out_spec = pl.BlockSpec((final_out, tile_b), lambda gi: (0, gi))
    param_specs = []
    for i in range(n_linear):
        param_specs.append(pl.BlockSpec(args[1 + 2 * i].shape, lambda gi: (0, 0)))
        param_specs.append(pl.BlockSpec(args[2 + 2 * i].shape, lambda gi: (0, 0)))

    # --- Tight VMEM budget (layout padded, x/out double-buffered) + headroom.
    c_item = jnp.dtype(compute_dtype).itemsize
    vmem_need = 2 * (_pad_bytes(input_dim, tile_b) + _pad_bytes(final_out, tile_b))
    for i in range(n_linear):
        w_item = 4 if (i == 0 and vpu_first_layer) else c_item
        vmem_need += _pad_bytes(dims[i + 1], dims[i], w_item) + _pad_bytes(dims[i + 1], 1)
    vmem_need += 3 * _pad_bytes(max(dims), tile_b)       # live activations + cast copy
    vmem_limit = int(min(max(3 * vmem_need, 8 << 20), 32 << 20))

    # --- Cost estimate so XLA schedules around the call sensibly.
    flops = sum(2 * B_pad * dims[i] * dims[i + 1] for i in range(n_linear))
    bytes_accessed = x_t.size * 4 + B_pad * final_out * 4
    for w, b in zip(weights, biases):
        bytes_accessed += (w.size + b.size) * 4
    cost = pl.CostEstimate(flops=flops, transcendentals=0,
                           bytes_accessed=bytes_accessed)

    out_fm = pl.pallas_call(
        _make_mlp_kernel(n_linear, vpu_first_layer, compute_dtype),
        out_shape=jax.ShapeDtypeStruct((final_out, B_pad), jnp.float32),
        grid=(grid_b,),
        in_specs=[x_spec] + param_specs,
        out_specs=out_spec,
        compiler_params=pltpu.CompilerParams(
            dimension_semantics=("parallel",),   # megacore over batch tiles (v7x)
            vmem_limit_bytes=vmem_limit,
        ),
        cost_estimate=cost,
    )(*args)

    # (final_out, B_pad) -> (B, s, output_dim); transpose is one cheap HBM pass.
    return out_fm.T[:B].reshape(B, s, output_dim)


def init_neural_rk_params(key, input_dim, hidden_dim, num_layers, output_dim, s):
    """Deterministic init mimicking PyTorch nn.Linear default (uniform ±1/sqrt(fan_in))."""
    dims = [input_dim] + [hidden_dim] * num_layers + [s * output_dim]
    weights, biases = [], []
    for i in range(len(dims) - 1):
        fan_in, fan_out = dims[i], dims[i + 1]
        key, kw, kb = jax.random.split(key, 3)
        bound = 1.0 / (fan_in ** 0.5)
        # PyTorch Linear weight layout: (out_features, in_features)
        w = jax.random.uniform(kw, (fan_out, fan_in), jnp.float32, -bound, bound)
        b = jax.random.uniform(kb, (fan_out,), jnp.float32, -bound, bound)
        weights.append(w)
        biases.append(b)
    return weights, biases


if __name__ == "__main__":
    # Module defaults: input_dim=2, hidden_dim=64, num_layers=3, output_dim=2, RK4 => s=4
    input_dim, hidden_dim, num_layers, output_dim, s = 2, 64, 3, 2, 4

    key = jax.random.PRNGKey(0)
    weights, biases = init_neural_rk_params(
        key, input_dim, hidden_dim, num_layers, output_dim, s)

    def ref_forward(xv):
        h = xv
        for i, (w, b) in enumerate(zip(weights, biases)):
            h = h @ w.T + b
            if i < len(weights) - 1:
                h = jnp.maximum(h, 0.0)
        return h.reshape(xv.shape[0], s, output_dim)

    # Test 1: small batch, f32 MXU operands, single grid step -> exact match.
    key, kx = jax.random.split(key)
    x_small = jax.random.normal(kx, (20, input_dim), jnp.float32)
    out1 = jax.block_until_ready(
        neural_rk_forward(x_small, weights, biases, s=s, output_dim=output_dim,
                          compute_dtype=jnp.float32))
    ref1 = ref_forward(x_small)
    assert out1.shape == (20, s, output_dim), out1.shape
    assert jnp.allclose(out1, ref1, atol=1e-5, rtol=1e-5), \
        float(jnp.max(jnp.abs(out1 - ref1)))

    # Test 2: default bf16 MXU operands + automatic tiling (>=2 grid steps for
    # megacore), non-divisible batch -> padding path; loose tolerance.
    key, kx = jax.random.split(key)
    x_mid = jax.random.normal(kx, (300, input_dim), jnp.float32)
    out2 = jax.block_until_ready(
        neural_rk_forward(x_mid, weights, biases, s=s, output_dim=output_dim))
    ref2 = ref_forward(x_mid)
    assert out2.shape == (300, s, output_dim), out2.shape
    assert jnp.allclose(out2, ref2, atol=3e-2, rtol=3e-2), \
        float(jnp.max(jnp.abs(out2 - ref2)))

    # Test 3: forced small tile -> 3-step grid, f32 exact path.
    out3 = jax.block_until_ready(
        neural_rk_forward(x_mid, weights, biases, s=s, output_dim=output_dim,
                          tile_b=128, compute_dtype=jnp.float32))
    assert out3.shape == (300, s, output_dim), out3.shape
    assert jnp.allclose(out3, ref2, atol=1e-5, rtol=1e-5), \
        float(jnp.max(jnp.abs(out3 - ref2)))

    print("KERNEL_OK")
</pallas_src>

<mosaic_0001>
module attributes {stable_mosaic.version = 11 : i64} {
  func.func @kernel(%arg0: i32, %arg1: memref<2x128xf32, #tpu.memory_space<vmem>>, %arg2: memref<64x2xf32, #tpu.memory_space<vmem>>, %arg3: memref<64x1xf32, #tpu.memory_space<vmem>>, %arg4: memref<64x64xf32, #tpu.memory_space<vmem>>, %arg5: memref<64x1xf32, #tpu.memory_space<vmem>>, %arg6: memref<64x64xf32, #tpu.memory_space<vmem>>, %arg7: memref<64x1xf32, #tpu.memory_space<vmem>>, %arg8: memref<8x64xf32, #tpu.memory_space<vmem>>, %arg9: memref<8x1xf32, #tpu.memory_space<vmem>>, %arg10: memref<8x128xf32, #tpu.memory_space<vmem>>) attributes {dimension_semantics = [#tpu.dimension_semantics<parallel>], iteration_bounds = array<i64: 1>, scalar_prefetch = 0 : i64, scratch_operands = 0 : i64, tpu.core_type = #tpu.core_type<tc>, window_params = [{transform_indices = @transform_0, window_bounds = array<i64: 2, 128>}, {pipeline_mode = #tpu.pipeline_mode<synchronous>, transform_indices = @transform_1, window_bounds = array<i64: 64, 2>}, {pipeline_mode = #tpu.pipeline_mode<synchronous>, transform_indices = @transform_2, window_bounds = array<i64: 64, 1>}, {pipeline_mode = #tpu.pipeline_mode<synchronous>, transform_indices = @transform_3, window_bounds = array<i64: 64, 64>}, {pipeline_mode = #tpu.pipeline_mode<synchronous>, transform_indices = @transform_4, window_bounds = array<i64: 64, 1>}, {pipeline_mode = #tpu.pipeline_mode<synchronous>, transform_indices = @transform_5, window_bounds = array<i64: 64, 64>}, {pipeline_mode = #tpu.pipeline_mode<synchronous>, transform_indices = @transform_6, window_bounds = array<i64: 64, 1>}, {pipeline_mode = #tpu.pipeline_mode<synchronous>, transform_indices = @transform_7, window_bounds = array<i64: 8, 64>}, {pipeline_mode = #tpu.pipeline_mode<synchronous>, transform_indices = @transform_8, window_bounds = array<i64: 8, 1>}, {transform_indices = @transform_9, window_bounds = array<i64: 8, 128>}]} {
    %c0 = arith.constant 0 : index
    %c0_0 = arith.constant 0 : index
    %0 = vector.load %arg1[%c0, %c0_0] : memref<2x128xf32, #tpu.memory_space<vmem>>, vector<2x128xf32>
    %c0_1 = arith.constant 0 : index
    %c0_2 = arith.constant 0 : index
    %1 = vector.load %arg3[%c0_1, %c0_2] : memref<64x1xf32, #tpu.memory_space<vmem>>, vector<64x1xf32>
    %c0_3 = arith.constant 0 : index
    %c0_4 = arith.constant 0 : index
    %2 = vector.load %arg2[%c0_3, %c0_4] : memref<64x2xf32, #tpu.memory_space<vmem>>, vector<64x2xf32>
    %3 = vector.extract_strided_slice %2 {offsets = [0, 0], sizes = [64, 1], strides = [1, 1]} : vector<64x2xf32> to vector<64x1xf32>
    %4 = vector.extract_strided_slice %0 {offsets = [0, 0], sizes = [1, 128], strides = [1, 1]} : vector<2x128xf32> to vector<1x128xf32>
    %5 = vector.broadcast %3 : vector<64x1xf32> to vector<64x128xf32>
    %6 = vector.broadcast %4 : vector<1x128xf32> to vector<64x128xf32>
    %7 = arith.mulf %5, %6 : vector<64x128xf32>
    %8 = vector.broadcast %1 : vector<64x1xf32> to vector<64x128xf32>
    %9 = arith.addf %8, %7 : vector<64x128xf32>
    %10 = vector.extract_strided_slice %2 {offsets = [0, 1], sizes = [64, 1], strides = [1, 1]} : vector<64x2xf32> to vector<64x1xf32>
    %11 = vector.extract_strided_slice %0 {offsets = [1, 0], sizes = [1, 128], strides = [1, 1]} : vector<2x128xf32> to vector<1x128xf32>
    %12 = vector.broadcast %10 : vector<64x1xf32> to vector<64x128xf32>
    %13 = vector.broadcast %11 : vector<1x128xf32> to vector<64x128xf32>
    %14 = arith.mulf %12, %13 : vector<64x128xf32>
    %15 = arith.addf %9, %14 : vector<64x128xf32>
    %cst = arith.constant 0.000000e+00 : f32
    %16 = vector.broadcast %cst : f32 to vector<64x128xf32>
    %17 = arith.maximumf %15, %16 : vector<64x128xf32>
    %c0_5 = arith.constant 0 : index
    %c0_6 = arith.constant 0 : index
    %18 = vector.load %arg5[%c0_5, %c0_6] : memref<64x1xf32, #tpu.memory_space<vmem>>, vector<64x1xf32>
    %c0_7 = arith.constant 0 : index
    %c0_8 = arith.constant 0 : index
    %19 = vector.load %arg4[%c0_7, %c0_8] : memref<64x64xf32, #tpu.memory_space<vmem>>, vector<64x64xf32>
    %cst_9 = arith.constant dense<0.000000e+00> : vector<64x128xf32>
    %20 = tpu.matmul %19, %17, %cst_9 {dimension_numbers = #tpu.dot_dimension_numbers<[1], [0], [0], [1], [0, 0, 1, 1], [], []>} : vector<64x64xf32>, vector<64x128xf32>, vector<64x128xf32> -> vector<64x128xf32>
    %21 = vector.broadcast %18 : vector<64x1xf32> to vector<64x128xf32>
    %22 = arith.addf %20, %21 : vector<64x128xf32>
    %cst_10 = arith.constant 0.000000e+00 : f32
    %23 = vector.broadcast %cst_10 : f32 to vector<64x128xf32>
    %24 = arith.maximumf %22, %23 : vector<64x128xf32>
    %c0_11 = arith.constant 0 : index
    %c0_12 = arith.constant 0 : index
    %25 = vector.load %arg7[%c0_11, %c0_12] : memref<64x1xf32, #tpu.memory_space<vmem>>, vector<64x1xf32>
    %c0_13 = arith.constant 0 : index
    %c0_14 = arith.constant 0 : index
    %26 = vector.load %arg6[%c0_13, %c0_14] : memref<64x64xf32, #tpu.memory_space<vmem>>, vector<64x64xf32>
    %cst_15 = arith.constant dense<0.000000e+00> : vector<64x128xf32>
    %27 = tpu.matmul %26, %24, %cst_15 {dimension_numbers = #tpu.dot_dimension_numbers<[1], [0], [0], [1], [0, 0, 1, 1], [], []>} : vector<64x64xf32>, vector<64x128xf32>, vector<64x128xf32> -> vector<64x128xf32>
    %28 = vector.broadcast %25 : vector<64x1xf32> to vector<64x128xf32>
    %29 = arith.addf %27, %28 : vector<64x128xf32>
    %cst_16 = arith.constant 0.000000e+00 : f32
    %30 = vector.broadcast %cst_16 : f32 to vector<64x128xf32>
    %31 = arith.maximumf %29, %30 : vector<64x128xf32>
    %c0_17 = arith.constant 0 : index
    %c0_18 = arith.constant 0 : index
    %32 = vector.load %arg9[%c0_17, %c0_18] : memref<8x1xf32, #tpu.memory_space<vmem>>, vector<8x1xf32>
    %c0_19 = arith.constant 0 : index
    %c0_20 = arith.constant 0 : index
    %33 = vector.load %arg8[%c0_19, %c0_20] : memref<8x64xf32, #tpu.memory_space<vmem>>, vector<8x64xf32>
    %cst_21 = arith.constant dense<0.000000e+00> : vector<8x128xf32>
    %34 = tpu.matmul %33, %31, %cst_21 {dimension_numbers = #tpu.dot_dimension_numbers<[1], [0], [0], [1], [0, 0, 1, 1], [], []>} : vector<8x64xf32>, vector<64x128xf32>, vector<8x128xf32> -> vector<8x128xf32>
    %35 = vector.broadcast %32 : vector<8x1xf32> to vector<8x128xf32>
    %36 = arith.addf %34, %35 : vector<8x128xf32>
    %c0_22 = arith.constant 0 : index
    %c0_23 = arith.constant 0 : index
    %37 = vector.load %arg10[%c0_22, %c0_23] : memref<8x128xf32, #tpu.memory_space<vmem>>, vector<8x128xf32>
    tpu.vector_store %arg10[%c0_22, %c0_23], %36 {strides = array<i32>} : memref<8x128xf32, #tpu.memory_space<vmem>>, vector<8x128xf32>,
    return
  }
  func.func @transform_0(%arg0: i32) -> (i32, i32) {
    %c0_i32 = arith.constant 0 : i32
    %c0_i32_0 = arith.constant 0 : i32
    return %c0_i32, %arg0 : i32, i32
  }
  func.func @transform_1(%arg0: i32) -> (i32, i32) {
    %c0_i32 = arith.constant 0 : i32
    %c0_i32_0 = arith.constant 0 : i32
    %c0_i32_1 = arith.constant 0 : i32
    return %c0_i32, %c0_i32_0 : i32, i32
  }
  func.func @transform_2(%arg0: i32) -> (i32, i32) {
    %c0_i32 = arith.constant 0 : i32
    %c0_i32_0 = arith.constant 0 : i32
    %c0_i32_1 = arith.constant 0 : i32
    return %c0_i32, %c0_i32_0 : i32, i32
  }
  func.func @transform_3(%arg0: i32) -> (i32, i32) {
    %c0_i32 = arith.constant 0 : i32
    %c0_i32_0 = arith.constant 0 : i32
    %c0_i32_1 = arith.constant 0 : i32
    return %c0_i32, %c0_i32_0 : i32, i32
  }
  func.func @transform_4(%arg0: i32) -> (i32, i32) {
    %c0_i32 = arith.constant 0 : i32
    %c0_i32_0 = arith.constant 0 : i32
    %c0_i32_1 = arith.constant 0 : i32
    return %c0_i32, %c0_i32_0 : i32, i32
  }
  func.func @transform_5(%arg0: i32) -> (i32, i32) {
    %c0_i32 = arith.constant 0 : i32
    %c0_i32_0 = arith.constant 0 : i32
    %c0_i32_1 = arith.constant 0 : i32
    return %c0_i32, %c0_i32_0 : i32, i32
  }
  func.func @transform_6(%arg0: i32) -> (i32, i32) {
    %c0_i32 = arith.constant 0 : i32
    %c0_i32_0 = arith.constant 0 : i32
    %c0_i32_1 = arith.constant 0 : i32
    return %c0_i32, %c0_i32_0 : i32, i32
  }
  func.func @transform_7(%arg0: i32) -> (i32, i32) {
    %c0_i32 = arith.constant 0 : i32
    %c0_i32_0 = arith.constant 0 : i32
    %c0_i32_1 = arith.constant 0 : i32
    return %c0_i32, %c0_i32_0 : i32, i32
  }
  func.func @transform_8(%arg0: i32) -> (i32, i32) {
    %c0_i32 = arith.constant 0 : i32
    %c0_i32_0 = arith.constant 0 : i32
    %c0_i32_1 = arith.constant 0 : i32
    return %c0_i32, %c0_i32_0 : i32, i32
  }
  func.func @transform_9(%arg0: i32) -> (i32, i32) {
    %c0_i32 = arith.constant 0 : i32
    %c0_i32_0 = arith.constant 0 : i32
    return %c0_i32, %arg0 : i32, i32
  }
}

</mosaic_0001>

<llo_original>
// kernel: tpu_custom_call.1
$region0: #{tpu_custom_call.1}
  #allocation0 [shape = 'u32[]', space=smem, size = 0x4, offset = 0x4, fixed_abs, tag = 'smem constant byte address 0x4 - core index']
  #allocation1 [shape = 'u32[144,128]{1,0:T(1,128)}', space=vmem, size = 0x12000, scoped, tag = 'internal scratch']
  %s0 = inlined_call_operand.vmem [shape: f32[2,128], index: 0, kind: input, shape index: {}]
  %s1 = inlined_call_operand.vmem [shape: f32[64,2], index: 1, kind: input, shape index: {}]
  %s2 = inlined_call_operand.vmem [shape: f32[64,1], index: 2, kind: input, shape index: {}]
  %s3 = inlined_call_operand.vmem [shape: f32[64,64], index: 3, kind: input, shape index: {}]
  %s4 = inlined_call_operand.vmem [shape: f32[64,1], index: 4, kind: input, shape index: {}]
  %s5 = inlined_call_operand.vmem [shape: f32[64,64], index: 5, kind: input, shape index: {}]
  %s6 = inlined_call_operand.vmem [shape: f32[64,1], index: 6, kind: input, shape index: {}]
  %s7 = inlined_call_operand.vmem [shape: f32[8,64], index: 7, kind: input, shape index: {}]
  %s8 = inlined_call_operand.vmem [shape: f32[8,1], index: 8, kind: input, shape index: {}]
  %s9 = inlined_call_operand.hbm [shape: f32[8,128], index: 9, kind: output, shape index: {}]
  %s10 = sld [smem:[#allocation0]]
  $region46: #{tpu_custom_call.1} parent=0
    _
  %s12 = ssub.s32 1, %s10
  %s13 = scalar_select 0, %s12, %s10
  $region1: #{tpu_custom_call.1} parent=0
    #allocation2 [shape = 'u8[4096]{0}', space=vmem, size = 0x1000, scoped, tag = 'output window, operand 0, single buffered']
    #allocation3 [shape = 's32[1]{0}', space=sflag, size = 0x4, scoped, tag = 'scoped memory for tpu_custom_call.1']
    %14 = vsyncpa [#allocation3], 0
    // Predicated region
    $region2: #{tpu_custom_call.1} parent=1 // pred_check
      _
    $region3: #{tpu_custom_call.1} parent=1 // pred_check_branch
      %16 = sbr.rel (0) target = $region5
    $region4: #{tpu_custom_call.1} parent=1 // pred_region
      _
    $region5: #{tpu_custom_call.1} parent=1 // pred_fallthru
      _
    // Predicated region
    $region6: #{tpu_custom_call.1} parent=1 // pred_check
      _
    $region7: #{tpu_custom_call.1} parent=1 // pred_check_branch
      %18 = sbr.rel (0) target = $region9
    $region8: #{tpu_custom_call.1} parent=1 // pred_region
      _
    $region9: #{tpu_custom_call.1} parent=1 // pred_fallthru
      _
    // Predicated region
    $region10: #{tpu_custom_call.1} parent=1 // pred_check
      _
    $region11: #{tpu_custom_call.1} parent=1 // pred_check_branch
      %20 = sbr.rel (0) target = $region13
    $region12: #{tpu_custom_call.1} parent=1 // pred_region
      _
    $region13: #{tpu_custom_call.1} parent=1 // pred_fallthru
      _
    // Predicated region
    $region14: #{tpu_custom_call.1} parent=1 // pred_check
      _
    $region15: #{tpu_custom_call.1} parent=1 // pred_check_branch
      %22 = sbr.rel (0) target = $region17
    $region16: #{tpu_custom_call.1} parent=1 // pred_region
      _
    $region17: #{tpu_custom_call.1} parent=1 // pred_fallthru
      _
    // Predicated region
    $region18: #{tpu_custom_call.1} parent=1 // pred_check
      _
    $region19: #{tpu_custom_call.1} parent=1 // pred_check_branch
      %24 = sbr.rel (0) target = $region21
    $region20: #{tpu_custom_call.1} parent=1 // pred_region
      _
    $region21: #{tpu_custom_call.1} parent=1 // pred_fallthru
      _
    // Predicated region
    $region22: #{tpu_custom_call.1} parent=1 // pred_check
      _
    $region23: #{tpu_custom_call.1} parent=1 // pred_check_branch
      %26 = sbr.rel (0) target = $region25
    $region24: #{tpu_custom_call.1} parent=1 // pred_region
      _
    $region25: #{tpu_custom_call.1} parent=1 // pred_fallthru
      _
    // Predicated region
    $region26: #{tpu_custom_call.1} parent=1 // pred_check
      _
    $region27: #{tpu_custom_call.1} parent=1 // pred_check_branch
      %28 = sbr.rel (0) target = $region29
    $region28: #{tpu_custom_call.1} parent=1 // pred_region
      _
    $region29: #{tpu_custom_call.1} parent=1 // pred_fallthru
      _
    // Predicated region
    $region30: #{tpu_custom_call.1} parent=1 // pred_check
      _
    $region31: #{tpu_custom_call.1} parent=1 // pred_check_branch
      %30 = sbr.rel (0) target = $region33
    $region32: #{tpu_custom_call.1} parent=1 // pred_region
      _
    $region33: #{tpu_custom_call.1} parent=1 // pred_fallthru
      _
    // Predicated region
    $region34: #{tpu_custom_call.1} parent=1 // pred_check
      _
    $region35: #{tpu_custom_call.1} parent=1 // pred_check_branch
      %32 = sbr.rel (0) target = $region37
    $region36: #{tpu_custom_call.1} parent=1 // pred_region
      _
    $region37: #{tpu_custom_call.1} parent=1 // pred_fallthru
      _
    %v33 = vld [vmem:[%s0] sm:$0x3]
    %v34 = vld [vmem:[%s2] sm:$0xff]
    %v35 = vld [vmem:[%s2 + $0x8] sm:$0xff]
    %v36 = vld [vmem:[%s2 + $0x10] sm:$0xff]
    %v37 = vld [vmem:[%s2 + $0x18] sm:$0xff]
    %v38 = vld [vmem:[%s2 + $0x20] sm:$0xff]
    %v39 = vld [vmem:[%s2 + $0x28] sm:$0xff]
    %v40 = vld [vmem:[%s2 + $0x30] sm:$0xff]
    %v41 = vld [vmem:[%s2 + $0x38] sm:$0xff]
    %v42 = vld [vmem:[%s1] sm:$0xff]
    %v43 = vld [vmem:[%s1 + $0x8] sm:$0xff]
    %v44 = vld [vmem:[%s1 + $0x10] sm:$0xff]
    %v45 = vld [vmem:[%s1 + $0x18] sm:$0xff]
    %v46 = vld [vmem:[%s1 + $0x20] sm:$0xff]
    %v47 = vld [vmem:[%s1 + $0x28] sm:$0xff]
    %v48 = vld [vmem:[%s1 + $0x30] sm:$0xff]
    %v49 = vld [vmem:[%s1 + $0x38] sm:$0xff]
    %51 = vset.pattern.permute.xlu0 0
    %52 = vperm.xlu0 %51, %v42
    %v53 = vpop.permute.xlu0 %52
    %56 = vset.pattern.permute.xlu0 0
    %57 = vperm.xlu0 %56, %v43
    %v58 = vpop.permute.xlu0 %57
    %61 = vset.pattern.permute.xlu0 0
    %62 = vperm.xlu0 %61, %v44
    %v63 = vpop.permute.xlu0 %62
    %66 = vset.pattern.permute.xlu0 0
    %67 = vperm.xlu0 %66, %v45
    %v68 = vpop.permute.xlu0 %67
    %71 = vset.pattern.permute.xlu0 0
    %72 = vperm.xlu0 %71, %v46
    %v73 = vpop.permute.xlu0 %72
    %76 = vset.pattern.permute.xlu0 0
    %77 = vperm.xlu0 %76, %v47
    %v78 = vpop.permute.xlu0 %77
    %81 = vset.pattern.permute.xlu0 0
    %82 = vperm.xlu0 %81, %v48
    %v83 = vpop.permute.xlu0 %82
    %86 = vset.pattern.permute.xlu0 0
    %87 = vperm.xlu0 %86, %v49
    %v88 = vpop.permute.xlu0 %87
    %v90 = vlaneseq
    %v91 = vshrl.u32 %v90, 7
    %v92 = vsub.s32 0, %v91
    %v93 = vrot.slane %v33, %v92
    %v94 = vmul.f32 %v53, %v93
    %v95 = vmul.f32 %v58, %v93
    %v96 = vmul.f32 %v63, %v93
    %v97 = vmul.f32 %v68, %v93
    %v98 = vmul.f32 %v73, %v93
    %v99 = vmul.f32 %v78, %v93
    %v100 = vmul.f32 %v83, %v93
    %v101 = vmul.f32 %v88, %v93
    %103 = vset.pattern.permute.xlu0 0
    %104 = vperm.xlu0 %103, %v34
    %v105 = vpop.permute.xlu0 %104
    %108 = vset.pattern.permute.xlu0 0
    %109 = vperm.xlu0 %108, %v35
    %v110 = vpop.permute.xlu0 %109
    %113 = vset.pattern.permute.xlu0 0
    %114 = vperm.xlu0 %113, %v36
    %v115 = vpop.permute.xlu0 %114
    %118 = vset.pattern.permute.xlu0 0
    %119 = vperm.xlu0 %118, %v37
    %v120 = vpop.permute.xlu0 %119
    %123 = vset.pattern.permute.xlu0 0
    %124 = vperm.xlu0 %123, %v38
    %v125 = vpop.permute.xlu0 %124
    %128 = vset.pattern.permute.xlu0 0
    %129 = vperm.xlu0 %128, %v39
    %v130 = vpop.permute.xlu0 %129
    %133 = vset.pattern.permute.xlu0 0
    %134 = vperm.xlu0 %133, %v40
    %v135 = vpop.permute.xlu0 %134
    %138 = vset.pattern.permute.xlu0 0
    %139 = vperm.xlu0 %138, %v41
    %v140 = vpop.permute.xlu0 %139
    %v142 = vadd.f32 %v105, %v94
    %v143 = vadd.f32 %v110, %v95
    %v144 = vadd.f32 %v115, %v96
    %v145 = vadd.f32 %v120, %v97
    %v146 = vadd.f32 %v125, %v98
    %v147 = vadd.f32 %v130, %v99
    %v148 = vadd.f32 %v135, %v100
    %v149 = vadd.f32 %v140, %v101
    %150 = vset.pattern.permute.xlu0 1
    %151 = vperm.xlu0 %150, %v42
    %v152 = vpop.permute.xlu0 %151
    %154 = vset.pattern.permute.xlu0 1
    %155 = vperm.xlu0 %154, %v43
    %v156 = vpop.permute.xlu0 %155
    %158 = vset.pattern.permute.xlu0 1
    %159 = vperm.xlu0 %158, %v44
    %v160 = vpop.permute.xlu0 %159
    %162 = vset.pattern.permute.xlu0 1
    %163 = vperm.xlu0 %162, %v45
    %v164 = vpop.permute.xlu0 %163
    %166 = vset.pattern.permute.xlu0 1
    %167 = vperm.xlu0 %166, %v46
    %v168 = vpop.permute.xlu0 %167
    %170 = vset.pattern.permute.xlu0 1
    %171 = vperm.xlu0 %170, %v47
    %v172 = vpop.permute.xlu0 %171
    %174 = vset.pattern.permute.xlu0 1
    %175 = vperm.xlu0 %174, %v48
    %v176 = vpop.permute.xlu0 %175
    %178 = vset.pattern.permute.xlu0 1
    %179 = vperm.xlu0 %178, %v49
    %v180 = vpop.permute.xlu0 %179
    %v182 = vlaneseq
    %v183 = vshrl.u32 %v182, 7
    %v184 = vsub.s32 1, %v183
    %v185 = vrot.slane %v33, %v184
    %v186 = vmul.f32 %v152, %v185
    %v187 = vmul.f32 %v156, %v185
    %v188 = vmul.f32 %v160, %v185
    %v189 = vmul.f32 %v164, %v185
    %v190 = vmul.f32 %v168, %v185
    %v191 = vmul.f32 %v172, %v185
    %v192 = vmul.f32 %v176, %v185
    %v193 = vmul.f32 %v180, %v185
    %v194 = vadd.f32 %v142, %v186
    %v195 = vadd.f32 %v143, %v187
    %v196 = vadd.f32 %v144, %v188
    %v197 = vadd.f32 %v145, %v189
    %v198 = vadd.f32 %v146, %v190
    %v199 = vadd.f32 %v147, %v191
    %v200 = vadd.f32 %v148, %v192
    %v201 = vadd.f32 %v149, %v193
    %v202 = vmax.f32 %v194, 0.0
    %v203 = vmax.f32 %v195, 0.0
    %v204 = vmax.f32 %v196, 0.0
    %v205 = vmax.f32 %v197, 0.0
    %v206 = vmax.f32 %v198, 0.0
    %v207 = vmax.f32 %v199, 0.0
    %v208 = vmax.f32 %v200, 0.0
    %v209 = vmax.f32 %v201, 0.0
    %v210 = vld [vmem:[%s4] sm:$0xff]
    %v211 = vld [vmem:[%s4 + $0x8] sm:$0xff]
    %v212 = vld [vmem:[%s4 + $0x10] sm:$0xff]
    %v213 = vld [vmem:[%s4 + $0x18] sm:$0xff]
    %v214 = vld [vmem:[%s4 + $0x20] sm:$0xff]
    %v215 = vld [vmem:[%s4 + $0x28] sm:$0xff]
    %v216 = vld [vmem:[%s4 + $0x30] sm:$0xff]
    %v217 = vld [vmem:[%s4 + $0x38] sm:$0xff]
    %v218 = vld [vmem:[%s3] sm:$0xff]
    %v219 = vld [vmem:[%s3 + $0x8] sm:$0xff]
    %v220 = vld [vmem:[%s3 + $0x10] sm:$0xff]
    %v221 = vld [vmem:[%s3 + $0x18] sm:$0xff]
    %v222 = vld [vmem:[%s3 + $0x20] sm:$0xff]
    %v223 = vld [vmem:[%s3 + $0x28] sm:$0xff]
    %v224 = vld [vmem:[%s3 + $0x30] sm:$0xff]
    %v225 = vld [vmem:[%s3 + $0x38] sm:$0xff]
    %227 = vset.pattern.permute.xlu0 0
    %228 = vperm.xlu0 %227, %v210
    %v229 = vpop.permute.xlu0 %228
    %232 = vset.pattern.permute.xlu0 0
    %233 = vperm.xlu0 %232, %v211
    %v234 = vpop.permute.xlu0 %233
    %237 = vset.pattern.permute.xlu0 0
    %238 = vperm.xlu0 %237, %v212
    %v239 = vpop.permute.xlu0 %238
    %242 = vset.pattern.permute.xlu0 0
    %243 = vperm.xlu0 %242, %v213
    %v244 = vpop.permute.xlu0 %243
    %247 = vset.pattern.permute.xlu0 0
    %248 = vperm.xlu0 %247, %v214
    %v249 = vpop.permute.xlu0 %248
    %252 = vset.pattern.permute.xlu0 0
    %253 = vperm.xlu0 %252, %v215
    %v254 = vpop.permute.xlu0 %253
    %257 = vset.pattern.permute.xlu0 0
    %258 = vperm.xlu0 %257, %v216
    %v259 = vpop.permute.xlu0 %258
    %262 = vset.pattern.permute.xlu0 0
    %263 = vperm.xlu0 %262, %v217
    %v264 = vpop.permute.xlu0 %263
    %vm266 = vcmask 523264
    %v268 = vsel %vm266, %v218, 0
    %v271 = vsel %vm266, %v219, 0
    %v274 = vsel %vm266, %v220, 0
    %v277 = vsel %vm266, %v221, 0
    %v280 = vsel %vm266, %v222, 0
    %v283 = vsel %vm266, %v223, 0
    %v286 = vsel %vm266, %v224, 0
    %v289 = vsel %vm266, %v225, 0
    %291 = vmatprep.subr.mxu0 0.0
    %292 = vmatpush1.msra.mxu0 %v202
    %293 = vmatprep.subr.mxu0 0.0
    %294 = vmatpush1.msra.mxu0 %v203
    %295 = vmatprep.subr.mxu0 0.0
    %296 = vmatpush1.msra.mxu0 %v204
    %297 = vmatprep.subr.mxu0 0.0
    %298 = vmatpush1.msra.mxu0 %v205
    %299 = vmatprep.subr.mxu0 0.0
    %300 = vmatpush1.msra.mxu0 %v206
    %301 = vmatprep.subr.mxu0 0.0
    %302 = vmatpush1.msra.mxu0 %v207
    %303 = vmatprep.subr.mxu0 0.0
    %304 = vmatpush1.msra.mxu0 %v208
    %305 = vmatprep.subr.mxu0 0.0
    %306 = vmatpush1.msra.mxu0 %v209
    %307 = vmatprep.subr.mxu0 0.0
    %308 = vmatpush1.msra.mxu0 0.0
    %309 = vmatprep.subr.mxu0 0.0
    %310 = vmatpush1.msra.mxu0 0.0
    %311 = vmatprep.subr.mxu0 0.0
    %312 = vmatpush1.msra.mxu0 0.0
    %313 = vmatprep.subr.mxu0 0.0
    %314 = vmatpush1.msra.mxu0 0.0
    %315 = vmatprep.subr.mxu0 0.0
    %316 = vmatpush1.msra.mxu0 0.0
    %317 = vmatprep.subr.mxu0 0.0
    %318 = vmatpush1.msra.mxu0 0.0
    %319 = vmatprep.subr.mxu0 0.0
    %320 = vmatpush1.msra.mxu0 0.0
    %321 = vmatprep.subr.mxu0 0.0
    %322 = vmatpush1.msra.mxu0 0.0
    %323 = vmatprep.subr.mxu0 0.0
    %324 = vmatpush1.msra.mxu0 0.0
    %325 = vmatprep.subr.mxu0 0.0
    %326 = vmatpush1.msra.mxu0 0.0
    %327 = vmatprep.subr.mxu0 0.0
    %328 = vmatpush1.msra.mxu0 0.0
    %329 = vmatprep.subr.mxu0 0.0
    %330 = vmatpush1.msra.mxu0 0.0
    %331 = vmatprep.subr.mxu0 0.0
    %332 = vmatpush1.msra.mxu0 0.0
    %333 = vmatprep.subr.mxu0 0.0
    %334 = vmatpush1.msra.mxu0 0.0
    %335 = vmatprep.subr.mxu0 0.0
    %336 = vmatpush1.msra.mxu0 0.0
    %337 = vmatprep.subr.mxu0 0.0
    %338 = vmatpush1.msra.mxu0 0.0
    %339 = vmatprep.subr.mxu0 0.0
    %340 = vmatpush1.msra.mxu0 0.0
    %341 = vmatprep.subr.mxu0 0.0
    %342 = vmatpush1.msra.mxu0 0.0
    %343 = vmatprep.subr.mxu0 0.0
    %344 = vmatpush1.msra.mxu0 0.0
    %345 = vmatprep.subr.mxu0 0.0
    %346 = vmatpush1.msra.mxu0 0.0
    %347 = vmatprep.subr.mxu0 0.0
    %348 = vmatpush1.msra.mxu0 0.0
    %349 = vmatprep.subr.mxu0 0.0
    %350 = vmatpush1.msra.mxu0 0.0
    %351 = vmatprep.subr.mxu0 0.0
    %352 = vmatpush1.msra.mxu0 0.0
    %353 = vmatprep.subr.mxu0 0.0
    %354 = vmatpush1.msra.mxu0 0.0
    %355 = vmatprep.mubr.f32.mxu0 0.0
    %356 = vmatmul.mubr.f32.gmra.mrb[0].mxu0 %v268
    %v357 = vpop.f32.mrb[0].mxu0
    %v358 = vadd.f32 %v229, %v357
    %v359 = vpop.f32.mrb[0].mxu0
    %360 = vmatprep.mubr.f32.mxu0 0.0
    %361 = vmatmul.mubr.f32.gmra.mrb[0].mxu0 %v271
    %v362 = vpop.f32.mrb[0].mxu0
    %v363 = vadd.f32 %v234, %v362
    %v364 = vpop.f32.mrb[0].mxu0
    %365 = vmatprep.mubr.f32.mxu0 0.0
    %366 = vmatmul.mubr.f32.gmra.mrb[0].mxu0 %v274
    %v367 = vpop.f32.mrb[0].mxu0
    %v368 = vadd.f32 %v239, %v367
    %v369 = vpop.f32.mrb[0].mxu0
    %370 = vmatprep.mubr.f32.mxu0 0.0
    %371 = vmatmul.mubr.f32.gmra.mrb[0].mxu0 %v277
    %v372 = vpop.f32.mrb[0].mxu0
    %v373 = vadd.f32 %v244, %v372
    %v374 = vpop.f32.mrb[0].mxu0
    %375 = vmatprep.mubr.f32.mxu0 0.0
    %376 = vmatmul.mubr.f32.gmra.mrb[0].mxu0 %v280
    %v377 = vpop.f32.mrb[0].mxu0
    %v378 = vadd.f32 %v249, %v377
    %v379 = vpop.f32.mrb[0].mxu0
    %380 = vmatprep.mubr.f32.mxu0 0.0
    %381 = vmatmul.mubr.f32.gmra.mrb[0].mxu0 %v283
    %v382 = vpop.f32.mrb[0].mxu0
    %v383 = vadd.f32 %v254, %v382
    %v384 = vpop.f32.mrb[0].mxu0
    %385 = vmatprep.mubr.f32.mxu0 0.0
    %386 = vmatmul.mubr.f32.gmra.mrb[0].mxu0 %v286
    %v387 = vpop.f32.mrb[0].mxu0
    %v388 = vadd.f32 %v259, %v387
    %v389 = vpop.f32.mrb[0].mxu0
    %390 = vmatprep.mubr.f32.mxu0 0.0
    %391 = vmatmul.mubr.f32.gmra.mrb[0].mxu0 %v289
    %v392 = vpop.f32.mrb[0].mxu0
    %v393 = vadd.f32 %v264, %v392
    %v394 = vpop.f32.mrb[0].mxu0
    %395 = vdwg.mxu0
    %v396 = vmax.f32 %v358, 0.0
    %v397 = vmax.f32 %v363, 0.0
    %v398 = vmax.f32 %v368, 0.0
    %v399 = vmax.f32 %v373, 0.0
    %v400 = vmax.f32 %v378, 0.0
    %v401 = vmax.f32 %v383, 0.0
    %v402 = vmax.f32 %v388, 0.0
    %v403 = vmax.f32 %v393, 0.0
    %v404 = vld [vmem:[%s6] sm:$0xff]
    %v405 = vld [vmem:[%s6 + $0x8] sm:$0xff]
    %v406 = vld [vmem:[%s6 + $0x10] sm:$0xff]
    %v407 = vld [vmem:[%s6 + $0x18] sm:$0xff]
    %v408 = vld [vmem:[%s6 + $0x20] sm:$0xff]
    %v409 = vld [vmem:[%s6 + $0x28] sm:$0xff]
    %v410 = vld [vmem:[%s6 + $0x30] sm:$0xff]
    %v411 = vld [vmem:[%s6 + $0x38] sm:$0xff]
    %v412 = vld [vmem:[%s5] sm:$0xff]
    %v413 = vld [vmem:[%s5 + $0x8] sm:$0xff]
    %v414 = vld [vmem:[%s5 + $0x10] sm:$0xff]
    %v415 = vld [vmem:[%s5 + $0x18] sm:$0xff]
    %v416 = vld [vmem:[%s5 + $0x20] sm:$0xff]
    %v417 = vld [vmem:[%s5 + $0x28] sm:$0xff]
    %v418 = vld [vmem:[%s5 + $0x30] sm:$0xff]
    %v419 = vld [vmem:[%s5 + $0x38] sm:$0xff]
    %421 = vset.pattern.permute.xlu0 0
    %422 = vperm.xlu0 %421, %v404
    %v423 = vpop.permute.xlu0 %422
    %426 = vset.pattern.permute.xlu0 0
    %427 = vperm.xlu0 %426, %v405
    %v428 = vpop.permute.xlu0 %427
    %431 = vset.pattern.permute.xlu0 0
    %432 = vperm.xlu0 %431, %v406
    %v433 = vpop.permute.xlu0 %432
    %436 = vset.pattern.permute.xlu0 0
    %437 = vperm.xlu0 %436, %v407
    %v438 = vpop.permute.xlu0 %437
    %441 = vset.pattern.permute.xlu0 0
    %442 = vperm.xlu0 %441, %v408
    %v443 = vpop.permute.xlu0 %442
    %446 = vset.pattern.permute.xlu0 0
    %447 = vperm.xlu0 %446, %v409
    %v448 = vpop.permute.xlu0 %447
    %451 = vset.pattern.permute.xlu0 0
    %452 = vperm.xlu0 %451, %v410
    %v453 = vpop.permute.xlu0 %452
    %456 = vset.pattern.permute.xlu0 0
    %457 = vperm.xlu0 %456, %v411
    %v458 = vpop.permute.xlu0 %457
    %v461 = vsel %vm266, %v412, 0
    %v464 = vsel %vm266, %v413, 0
    %v467 = vsel %vm266, %v414, 0
    %v470 = vsel %vm266, %v415, 0
    %v473 = vsel %vm266, %v416, 0
    %v476 = vsel %vm266, %v417, 0
    %v479 = vsel %vm266, %v418, 0
    %v482 = vsel %vm266, %v419, 0
    %484 = vmatprep.subr.mxu0 0.0
    %485 = vmatpush1.msra.mxu0 %v396
    %486 = vmatprep.subr.mxu0 0.0
    %487 = vmatpush1.msra.mxu0 %v397
    %488 = vmatprep.subr.mxu0 0.0
    %489 = vmatpush1.msra.mxu0 %v398
    %490 = vmatprep.subr.mxu0 0.0
    %491 = vmatpush1.msra.mxu0 %v399
    %492 = vmatprep.subr.mxu0 0.0
    %493 = vmatpush1.msra.mxu0 %v400
    %494 = vmatprep.subr.mxu0 0.0
    %495 = vmatpush1.msra.mxu0 %v401
    %496 = vmatprep.subr.mxu0 0.0
    %497 = vmatpush1.msra.mxu0 %v402
    %498 = vmatprep.subr.mxu0 0.0
    %499 = vmatpush1.msra.mxu0 %v403
    %500 = vmatprep.subr.mxu0 0.0
    %501 = vmatpush1.msra.mxu0 0.0
    %502 = vmatprep.subr.mxu0 0.0
    %503 = vmatpush1.msra.mxu0 0.0
    %504 = vmatprep.subr.mxu0 0.0
    %505 = vmatpush1.msra.mxu0 0.0
    %506 = vmatprep.subr.mxu0 0.0
    %507 = vmatpush1.msra.mxu0 0.0
    %508 = vmatprep.subr.mxu0 0.0
    %509 = vmatpush1.msra.mxu0 0.0
    %510 = vmatprep.subr.mxu0 0.0
    %511 = vmatpush1.msra.mxu0 0.0
    %512 = vmatprep.subr.mxu0 0.0
    %513 = vmatpush1.msra.mxu0 0.0
    %514 = vmatprep.subr.mxu0 0.0
    %515 = vmatpush1.msra.mxu0 0.0
    %516 = vmatprep.subr.mxu0 0.0
    %517 = vmatpush1.msra.mxu0 0.0
    %518 = vmatprep.subr.mxu0 0.0
    %519 = vmatpush1.msra.mxu0 0.0
    %520 = vmatprep.subr.mxu0 0.0
    %521 = vmatpush1.msra.mxu0 0.0
    %522 = vmatprep.subr.mxu0 0.0
    %523 = vmatpush1.msra.mxu0 0.0
    %524 = vmatprep.subr.mxu0 0.0
    %525 = vmatpush1.msra.mxu0 0.0
    %526 = vmatprep.subr.mxu0 0.0
    %527 = vmatpush1.msra.mxu0 0.0
    %528 = vmatprep.subr.mxu0 0.0
    %529 = vmatpush1.msra.mxu0 0.0
    %530 = vmatprep.subr.mxu0 0.0
    %531 = vmatpush1.msra.mxu0 0.0
    %532 = vmatprep.subr.mxu0 0.0
    %533 = vmatpush1.msra.mxu0 0.0
    %534 = vmatprep.subr.mxu0 0.0
    %535 = vmatpush1.msra.mxu0 0.0
    %536 = vmatprep.subr.mxu0 0.0
    %537 = vmatpush1.msra.mxu0 0.0
    %538 = vmatprep.subr.mxu0 0.0
    %539 = vmatpush1.msra.mxu0 0.0
    %540 = vmatprep.subr.mxu0 0.0
    %541 = vmatpush1.msra.mxu0 0.0
    %542 = vmatprep.subr.mxu0 0.0
    %543 = vmatpush1.msra.mxu0 0.0
    %544 = vmatprep.subr.mxu0 0.0
    %545 = vmatpush1.msra.mxu0 0.0
    %546 = vmatprep.subr.mxu0 0.0
    %547 = vmatpush1.msra.mxu0 0.0
    %548 = vmatprep.mubr.f32.mxu0 0.0
    %549 = vmatmul.mubr.f32.gmra.mrb[0].mxu0 %v461
    %v550 = vpop.f32.mrb[0].mxu0
    %v551 = vadd.f32 %v423, %v550
    %v552 = vpop.f32.mrb[0].mxu0
    %553 = vmatprep.mubr.f32.mxu0 0.0
    %554 = vmatmul.mubr.f32.gmra.mrb[0].mxu0 %v464
    %v555 = vpop.f32.mrb[0].mxu0
    %v556 = vadd.f32 %v428, %v555
    %v557 = vpop.f32.mrb[0].mxu0
    %558 = vmatprep.mubr.f32.mxu0 0.0
    %559 = vmatmul.mubr.f32.gmra.mrb[0].mxu0 %v467
    %v560 = vpop.f32.mrb[0].mxu0
    %v561 = vadd.f32 %v433, %v560
    %v562 = vpop.f32.mrb[0].mxu0
    %563 = vmatprep.mubr.f32.mxu0 0.0
    %564 = vmatmul.mubr.f32.gmra.mrb[0].mxu0 %v470
    %v565 = vpop.f32.mrb[0].mxu0
    %v566 = vadd.f32 %v438, %v565
    %v567 = vpop.f32.mrb[0].mxu0
    %568 = vmatprep.mubr.f32.mxu0 0.0
    %569 = vmatmul.mubr.f32.gmra.mrb[0].mxu0 %v473
    %v570 = vpop.f32.mrb[0].mxu0
    %v571 = vadd.f32 %v443, %v570
    %v572 = vpop.f32.mrb[0].mxu0
    %573 = vmatprep.mubr.f32.mxu0 0.0
    %574 = vmatmul.mubr.f32.gmra.mrb[0].mxu0 %v476
    %v575 = vpop.f32.mrb[0].mxu0
    %v576 = vadd.f32 %v448, %v575
    %v577 = vpop.f32.mrb[0].mxu0
    %578 = vmatprep.mubr.f32.mxu0 0.0
    %579 = vmatmul.mubr.f32.gmra.mrb[0].mxu0 %v479
    %v580 = vpop.f32.mrb[0].mxu0
    %v581 = vadd.f32 %v453, %v580
    %v582 = vpop.f32.mrb[0].mxu0
    %583 = vmatprep.mubr.f32.mxu0 0.0
    %584 = vmatmul.mubr.f32.gmra.mrb[0].mxu0 %v482
    %v585 = vpop.f32.mrb[0].mxu0
    %v586 = vadd.f32 %v458, %v585
    %v587 = vpop.f32.mrb[0].mxu0
    %588 = vdwg.mxu0
    %v589 = vmax.f32 %v551, 0.0
    %v590 = vmax.f32 %v556, 0.0
    %v591 = vmax.f32 %v561, 0.0
    %v592 = vmax.f32 %v566, 0.0
    %v593 = vmax.f32 %v571, 0.0
    %v594 = vmax.f32 %v576, 0.0
    %v595 = vmax.f32 %v581, 0.0
    %v596 = vmax.f32 %v586, 0.0
    %v597 = vld [vmem:[%s8] sm:$0xff]
    %v598 = vld [vmem:[%s7] sm:$0xff]
    %600 = vset.pattern.permute.xlu0 0
    %601 = vperm.xlu0 %600, %v597
    %v602 = vpop.permute.xlu0 %601
    %v605 = vsel %vm266, %v598, 0
    %607 = vmatprep.subr.mxu0 0.0
    %608 = vmatpush1.msra.mxu0 %v589
    %609 = vmatprep.subr.mxu0 0.0
    %610 = vmatpush1.msra.mxu0 %v590
    %611 = vmatprep.subr.mxu0 0.0
    %612 = vmatpush1.msra.mxu0 %v591
    %613 = vmatprep.subr.mxu0 0.0
    %614 = vmatpush1.msra.mxu0 %v592
    %615 = vmatprep.subr.mxu0 0.0
    %616 = vmatpush1.msra.mxu0 %v593
    %617 = vmatprep.subr.mxu0 0.0
    %618 = vmatpush1.msra.mxu0 %v594
    %619 = vmatprep.subr.mxu0 0.0
    %620 = vmatpush1.msra.mxu0 %v595
    %621 = vmatprep.subr.mxu0 0.0
    %622 = vmatpush1.msra.mxu0 %v596
    %623 = vmatprep.subr.mxu0 0.0
    %624 = vmatpush1.msra.mxu0 0.0
    %625 = vmatprep.subr.mxu0 0.0
    %626 = vmatpush1.msra.mxu0 0.0
    %627 = vmatprep.subr.mxu0 0.0
    %628 = vmatpush1.msra.mxu0 0.0
    %629 = vmatprep.subr.mxu0 0.0
    %630 = vmatpush1.msra.mxu0 0.0
    %631 = vmatprep.subr.mxu0 0.0
    %632 = vmatpush1.msra.mxu0 0.0
    %633 = vmatprep.subr.mxu0 0.0
    %634 = vmatpush1.msra.mxu0 0.0
    %635 = vmatprep.subr.mxu0 0.0
    %636 = vmatpush1.msra.mxu0 0.0
    %637 = vmatprep.subr.mxu0 0.0
    %638 = vmatpush1.msra.mxu0 0.0
    %639 = vmatprep.subr.mxu0 0.0
    %640 = vmatpush1.msra.mxu0 0.0
    %641 = vmatprep.subr.mxu0 0.0
    %642 = vmatpush1.msra.mxu0 0.0
    %643 = vmatprep.subr.mxu0 0.0
    %644 = vmatpush1.msra.mxu0 0.0
    %645 = vmatprep.subr.mxu0 0.0
    %646 = vmatpush1.msra.mxu0 0.0
    %647 = vmatprep.subr.mxu0 0.0
    %648 = vmatpush1.msra.mxu0 0.0
    %649 = vmatprep.subr.mxu0 0.0
    %650 = vmatpush1.msra.mxu0 0.0
    %651 = vmatprep.subr.mxu0 0.0
    %652 = vmatpush1.msra.mxu0 0.0
    %653 = vmatprep.subr.mxu0 0.0
    %654 = vmatpush1.msra.mxu0 0.0
    %655 = vmatprep.subr.mxu0 0.0
    %656 = vmatpush1.msra.mxu0 0.0
    %657 = vmatprep.subr.mxu0 0.0
    %658 = vmatpush1.msra.mxu0 0.0
    %659 = vmatprep.subr.mxu0 0.0
    %660 = vmatpush1.msra.mxu0 0.0
    %661 = vmatprep.subr.mxu0 0.0
    %662 = vmatpush1.msra.mxu0 0.0
    %663 = vmatprep.subr.mxu0 0.0
    %664 = vmatpush1.msra.mxu0 0.0
    %665 = vmatprep.subr.mxu0 0.0
    %666 = vmatpush1.msra.mxu0 0.0
    %667 = vmatprep.subr.mxu0 0.0
    %668 = vmatpush1.msra.mxu0 0.0
    %669 = vmatprep.subr.mxu0 0.0
    %670 = vmatpush1.msra.mxu0 0.0
    %671 = vmatprep.mubr.f32.mxu0 0.0
    %672 = vmatmul.mubr.f32.gmra.mrb[0].mxu0 %v605
    %v673 = vpop.f32.mrb[0].mxu0
    %v674 = vadd.f32 %v602, %v673
    %v675 = vpop.f32.mrb[0].mxu0
    %676 = vdwg.mxu0
    %677 = vst [vmem:[#allocation2] sm:$0xff] %v674
    // Predicated region
    $region38: #{tpu_custom_call.1} parent=1 // pred_check
      _
    $region39: #{tpu_custom_call.1} parent=1 // pred_check_branch
      %679 = sbr.rel (0) target = $region41
    $region40: #{tpu_custom_call.1} parent=1 // pred_region
      %s681 = ssub.s32 128, 128
      %682 = vsyncadd [#allocation3], %s681
      %s684 = sshll.u32 [#allocation2], 4
      %s685 = int_to_ptr.vmem [resolvable:$true] %s684
      %687 = dma.vmem_to_hbm [thread:$0]  %s685, 128, %s9, [#allocation3]
    $region41: #{tpu_custom_call.1} parent=1 // pred_fallthru
      _
    // Predicated region
    $region42: #{tpu_custom_call.1} parent=1 // pred_check
      _
    $region43: #{tpu_custom_call.1} parent=1 // pred_check_branch
      %689 = sbr.rel (0) target = $region45
    $region44: #{tpu_custom_call.1} parent=1 // pred_region
      %690 = dma.done [#allocation3], 128
    $region45: #{tpu_custom_call.1} parent=1 // pred_fallthru
      _
    %691 = vsyncpa [#allocation3], 1

</llo_original>
